<compile_context>
chip_gen: v6e
topology: v6e:2x2x1
jax: 0.10.0
libtpu: 0.0.40
codegen_flags: <defaults>
</compile_context>

<pallas_src>
import functools
import math

import jax
import jax.numpy as jnp
from jax.experimental import pallas as pl
from jax.experimental.pallas import tpu as pltpu


def _expand_padding(padding, ndim):
    """PyTorch-style flat padding tuple -> per-dim (lo, hi), front-to-back order."""
    padding = tuple(int(p) for p in padding)
    assert len(padding) % 2 == 0, "padding must have an even number of entries"
    n_pairs = len(padding) // 2
    assert n_pairs <= ndim, "padding specifies more dims than the input has"
    pads = [(0, 0)] * ndim
    for i in range(n_pairs):
        lo, hi = padding[2 * i], padding[2 * i + 1]
        # TODO(synk): negative padding (cropping) is not implemented.
        assert lo >= 0 and hi >= 0, "negative (cropping) padding is not supported"
        pads[ndim - 1 - i] = (lo, hi)
    return pads


def _validate_value(value, dtype):
    dtype = jnp.dtype(dtype)
    if jnp.issubdtype(dtype, jnp.integer) or dtype == jnp.bool_:
        if float(value) != int(value):
            raise ValueError(f"pad value {value!r} is not representable in {dtype}")
    return value


def _choose_feature_tile(d, s_in, s_out, itemsize, budget_bytes=16 << 20):
    """Largest multiple-of-128 feature tile dividing d that keeps the
    double-buffered (input + output) block footprint under budget."""
    if d % 128 != 0:
        return d  # small / odd feature dim: no lane tiling possible
    cands = sorted(
        {c for c in (d, 2048, 1024, 512, 256, 128)
         if c <= d and d % c == 0 and c % 128 == 0},
        reverse=True,
    )
    for c in cands:
        if 2 * (s_in + s_out) * c * itemsize <= budget_bytes:
            return c
    return 128


# --------------------------------------------------------------------------
# Kernels
# --------------------------------------------------------------------------

def _seq_pad_kernel(x_ref, o_ref, *, pad_left, pad_right, s_in, value):
    """Pad the sequence (second-to-last) axis only.

    Blocks: x_ref (1, S, TD), o_ref (1, S_out, TD).  Halo rows are filled with
    `value`; the interior rows are copied exactly once.
    """
    td = o_ref.shape[-1]
    if pad_left > 0:
        o_ref[:, 0:pad_left, :] = jnp.full((1, pad_left, td), value, o_ref.dtype)
    if pad_right > 0:
        start = pad_left + s_in
        o_ref[:, start:start + pad_right, :] = jnp.full(
            (1, pad_right, td), value, o_ref.dtype)
    o_ref[:, pad_left:pad_left + s_in, :] = x_ref[...]


def _general_pad_kernel(x_ref, o_ref, *, lows, in_shape, value):
    """Arbitrary constant pad, single program, halo-only fill (each output
    element is written exactly once)."""
    ndim = len(in_shape)
    interior = tuple(slice(lo, lo + s) for lo, s in zip(lows, in_shape))
    for ax in range(ndim):
        lo = lows[ax]
        s = in_shape[ax]
        hi = o_ref.shape[ax] - lo - s
        prefix_idx = interior[:ax]                 # earlier axes: interior only
        prefix_shape = tuple(in_shape[:ax])
        suffix_idx = tuple(slice(None) for _ in range(ax + 1, ndim))
        suffix_shape = tuple(o_ref.shape[ax + 1:])
        if lo > 0:
            o_ref[prefix_idx + (slice(0, lo),) + suffix_idx] = jnp.full(
                prefix_shape + (lo,) + suffix_shape, value, o_ref.dtype)
        if hi > 0:
            o_ref[prefix_idx + (slice(lo + s, lo + s + hi),) + suffix_idx] = jnp.full(
                prefix_shape + (hi,) + suffix_shape, value, o_ref.dtype)
    o_ref[interior] = x_ref[...]


# --------------------------------------------------------------------------
# Wrapper
# --------------------------------------------------------------------------

def pallas_pad(x, padding, value=0.0):
    """Equivalent of torch.nn.functional.pad(x, padding, mode='constant', value=value)."""
    ndim = x.ndim
    pads = _expand_padding(padding, ndim)
    value = _validate_value(value, x.dtype)
    out_shape = tuple(s + lo + hi for s, (lo, hi) in zip(x.shape, pads))

    if all(p == (0, 0) for p in pads):
        return x

    itemsize = jnp.dtype(x.dtype).itemsize
    bytes_accessed = (math.prod(x.shape) + math.prod(out_shape)) * itemsize
    cost = pl.CostEstimate(flops=0, transcendentals=0, bytes_accessed=bytes_accessed)

    seq_only = (
        ndim >= 2
        and all(pads[a] == (0, 0) for a in range(ndim) if a != ndim - 2)
    )

    if seq_only:
        # ---- GBST hot path: pad only the second-to-last (sequence) axis. ----
        lead = x.shape[:-2]
        b = math.prod(lead) if lead else 1
        s_in, d = x.shape[-2], x.shape[-1]
        pad_left, pad_right = pads[ndim - 2]
        s_out = s_in + pad_left + pad_right

        x3 = x.reshape(b, s_in, d)
        td = _choose_feature_tile(d, s_in, s_out, itemsize)
        d_tiles = d // td

        kernel = functools.partial(
            _seq_pad_kernel,
            pad_left=pad_left, pad_right=pad_right, s_in=s_in, value=value)

        out3 = pl.pallas_call(
            kernel,
            out_shape=jax.ShapeDtypeStruct((b, s_out, d), x.dtype),
            grid_spec=pltpu.PrefetchScalarGridSpec(
                num_scalar_prefetch=0,
                grid=(b, d_tiles),
                in_specs=[pl.BlockSpec((1, s_in, td), lambda i, j: (i, 0, j))],
                out_specs=pl.BlockSpec((1, s_out, td), lambda i, j: (i, 0, j)),
            ),
            compiler_params=pltpu.CompilerParams(
                dimension_semantics=("parallel", "parallel"),
                vmem_limit_bytes=64 << 20,
            ),
            cost_estimate=cost,
        )(x3)
        return out3.reshape(lead + (s_out, d))

    # ---- Fallback: arbitrary padding pattern (last dim / leading dims). ----
    lows = tuple(lo for lo, _ in pads)
    kernel = functools.partial(
        _general_pad_kernel, lows=lows, in_shape=x.shape, value=value)
    return pl.pallas_call(
        kernel,
        out_shape=jax.ShapeDtypeStruct(out_shape, x.dtype),
        grid_spec=pltpu.PrefetchScalarGridSpec(
            num_scalar_prefetch=0,
            grid=(1,),
            in_specs=[pl.BlockSpec(x.shape, lambda i: (0,) * ndim)],
            out_specs=pl.BlockSpec(out_shape, lambda i: (0,) * ndim),
        ),
        compiler_params=pltpu.CompilerParams(
            dimension_semantics=("arbitrary",),
            vmem_limit_bytes=64 << 20,
        ),
        cost_estimate=cost,
    )(x)


class Pad:
    """JAX/Pallas mirror of the PyTorch module: holds static padding + value."""

    def __init__(self, padding, value=0.0):
        self.padding = tuple(int(p) for p in padding)
        self.value = float(value)

    def __call__(self, x):
        return pallas_pad(x, self.padding, self.value)


if __name__ == "__main__":
    key = jax.random.PRNGKey(0)

    # --- GBST hot path: pad the sequence axis of a (batch, seq, hidden) tensor.
    B, S, D = 2, 8, 32
    x = jax.random.normal(key, (B, S, D), dtype=jnp.float32)
    padding = (0, 0, 3, 5)  # PyTorch order: last dim (0, 0), seq (3, 5)
    mod = Pad(padding, value=0.0)
    out = jax.block_until_ready(mod(x))
    ref = jnp.pad(x, ((0, 0), (3, 5), (0, 0)), constant_values=0.0)
    assert out.shape == (B, S + 8, D), out.shape
    assert jnp.allclose(out, ref), "seq-pad mismatch vs reference"

    # --- Hot path with a lane-dense feature dim (D multiple of 128), 4-D input.
    G, D2 = 2, 128
    x4 = jax.random.normal(jax.random.PRNGKey(1), (B, G, S, D2), dtype=jnp.float32)
    mod4 = Pad((0, 0, 2, 1), value=-1.0)
    out4 = jax.block_until_ready(mod4(x4))
    ref4 = jnp.pad(x4, ((0, 0), (0, 0), (2, 1), (0, 0)), constant_values=-1.0)
    assert out4.shape == (B, G, S + 3, D2), out4.shape
    assert jnp.allclose(out4, ref4), "4-D seq-pad mismatch vs reference"

    # --- General fallback: pad the last (feature) dim on the right.
    mod_last = Pad((0, 5), value=2.0)
    out_last = jax.block_until_ready(mod_last(x))
    ref_last = jnp.pad(x, ((0, 0), (0, 0), (0, 5)), constant_values=2.0)
    assert out_last.shape == (B, S, D + 5), out_last.shape
    assert jnp.allclose(out_last, ref_last), "last-dim pad mismatch vs reference"

    print("KERNEL_OK")
</pallas_src>

<mosaic_0001>
module attributes {stable_mosaic.version = 11 : i64} {
  func.func @_seq_pad_kernel(%arg0: i32, %arg1: i32, %arg2: memref<1x8x32xf32, #tpu.memory_space<vmem>>, %arg3: memref<1x16x32xf32, #tpu.memory_space<vmem>>) attributes {dimension_semantics = [#tpu.dimension_semantics<parallel>, #tpu.dimension_semantics<parallel>], iteration_bounds = array<i64: 2, 1>, scalar_prefetch = 0 : i64, scratch_operands = 0 : i64, tpu.core_type = #tpu.core_type<tc>, window_params = [{transform_indices = @transform_0, window_bounds = array<i64: 1, 8, 32>}, {transform_indices = @transform_1, window_bounds = array<i64: 1, 16, 32>}]} {
    %cst = arith.constant 0.000000e+00 : f32
    %0 = vector.broadcast %cst : f32 to vector<1x3x32xf32>
    %c0 = arith.constant 0 : index
    %c0_0 = arith.constant 0 : index
    %c0_1 = arith.constant 0 : index
    %1 = vector.load %arg3[%c0, %c0_0, %c0_1] : memref<1x16x32xf32, #tpu.memory_space<vmem>>, vector<1x3x32xf32>
    tpu.vector_store %arg3[%c0, %c0_0, %c0_1], %0 {strides = array<i32>} : memref<1x16x32xf32, #tpu.memory_space<vmem>>, vector<1x3x32xf32>,
    %cst_2 = arith.constant 0.000000e+00 : f32
    %2 = vector.broadcast %cst_2 : f32 to vector<1x5x32xf32>
    %c0_3 = arith.constant 0 : index
    %c11 = arith.constant 11 : index
    %c0_4 = arith.constant 0 : index
    %3 = vector.load %arg3[%c0_3, %c11, %c0_4] : memref<1x16x32xf32, #tpu.memory_space<vmem>>, vector<1x5x32xf32>
    tpu.vector_store %arg3[%c0_3, %c11, %c0_4], %2 {strides = array<i32>} : memref<1x16x32xf32, #tpu.memory_space<vmem>>, vector<1x5x32xf32>,
    %c0_5 = arith.constant 0 : index
    %c0_6 = arith.constant 0 : index
    %c0_7 = arith.constant 0 : index
    %4 = vector.load %arg2[%c0_5, %c0_6, %c0_7] : memref<1x8x32xf32, #tpu.memory_space<vmem>>, vector<1x8x32xf32>
    %c0_8 = arith.constant 0 : index
    %c3 = arith.constant 3 : index
    %c0_9 = arith.constant 0 : index
    %5 = vector.load %arg3[%c0_8, %c3, %c0_9] : memref<1x16x32xf32, #tpu.memory_space<vmem>>, vector<1x8x32xf32>
    tpu.vector_store %arg3[%c0_8, %c3, %c0_9], %4 {strides = array<i32>} : memref<1x16x32xf32, #tpu.memory_space<vmem>>, vector<1x8x32xf32>,
    return
  }
  func.func @transform_0(%arg0: i32, %arg1: i32) -> (i32, i32, i32) {
    %c0_i32 = arith.constant 0 : i32
    %c0_i32_0 = arith.constant 0 : i32
    return %arg0, %c0_i32, %arg1 : i32, i32, i32
  }
  func.func @transform_1(%arg0: i32, %arg1: i32) -> (i32, i32, i32) {
    %c0_i32 = arith.constant 0 : i32
    %c0_i32_0 = arith.constant 0 : i32
    return %arg0, %c0_i32, %arg1 : i32, i32, i32
  }
}

</mosaic_0001>

<llo_original>
// kernel: tpu_custom_call.1
$region0: #{tpu_custom_call.1}
  #allocation0 [shape = 'u32[]', space=smem, size = 0x4, offset = 0x4, fixed_abs, tag = 'smem constant byte address 0x4 - core index']
  #allocation1 [shape = 'u32[144,128]{1,0:T(1,128)}', space=vmem, size = 0x12000, scoped, tag = 'internal scratch']
  %s0 = inlined_call_operand.hbm [shape: f32[2,8,32], index: 0, kind: input, shape index: {}]
  %s1 = inlined_call_operand.hbm [shape: f32[2,16,32], index: 1, kind: output, shape index: {}]
  %s2 = sld [smem:[#allocation0]]
  $region41: #{tpu_custom_call.1} parent=0
    _
  %s4 = ssub.s32 1, %s2
  %s5 = scalar_select 0, %s4, %s2
  $region1: #{tpu_custom_call.1} parent=0
    #allocation2 [shape = 'u8[8192]{0}', space=vmem, size = 0x2000, scoped, tag = 'input window, operand 0']
    #allocation3 [shape = 's32[2]{0}', space=sflag, size = 0x8, scoped, tag = 'scoped memory for tpu_custom_call.1']
    #allocation4 [shape = 's32[2]{0}', space=sflag, size = 0x8, scoped, tag = 'scoped memory for tpu_custom_call.1']
    #allocation5 [shape = 'u8[16384]{0}', space=vmem, size = 0x4000, scoped, tag = 'output window, operand 0']
    %6 = vsyncpa [#allocation3], 0
    %s7 = scalar_lea.sflag [#allocation3], 1
    %8 = vsyncpa %s7, 0
    %9 = vsyncpa [#allocation4], 0
    %s10 = scalar_lea.sflag [#allocation4], 1
    %11 = vsyncpa %s10, 0
    loop: start=0, step=1, limit=4
    $region2: #{tpu_custom_call.1} parent=1 // loop_pre_header
      _
    $region3: #{tpu_custom_call.1} parent=1 // loop_header
      %s13 = sphi 0, %s17
      %p14 = scmp.ge.s32.totalorder %s13, 4
      %s20 = sphi 0, %s32
      %s21 = sphi 0, %s28
      %s22 = sphi 0, %s20
      %s23 = sphi 0, %s21
      %s24 = sphi 0, %s22
      %s25 = sphi 0, %s23
      %s37 = sphi 0, %s39
      %s40 = sphi 0, %s37
      %s41 = sphi 0, %s40
      %s57 = sphi 0, %s41
      %s65 = sphi 0, %s67
      %s68 = sphi 0, %s65
      %s69 = sphi 0, %s68
      %s85 = sphi 0, %s69
    $region4: #{tpu_custom_call.1} parent=1 // loop_header_branch
      %16 = sbr.rel (%p14) target = $region8
    $region5: #{tpu_custom_call.1} parent=1 // loop_body
      %s18 = ssub.s32 %s13, 1
      %s19 = ssub.s32 %s13, 2
      %s26 = sadd.s32 1, %s21
      %p27 = scmp.ge.s32.totalorder %s26, 1
      %s28 = scalar_select %p27, 0, %s26
      %s29 = sadd.s32 1, %s20
      %s30 = scalar_select %p27, %s29, %s20
      %p31 = scmp.ge.s32.totalorder %s30, 2
      %s32 = scalar_select %p31, 0, %s30
      %s33 = ssub.s32 %s20, %s32
      %s34 = ssub.s32 %s21, %s28
      %s35 = sor.u32 %s33, %s34
      %p36 = scmp.eq.s32.totalorder %s35, 0
      %s38 = sadd.s32 %s37, 1
      %s39 = scalar_select %p36, %s37, %s38
      %p42 = pneg %p36
      %p43 = scmp.eq.s32.totalorder %s13, 1
      %p44 = por %p42, %p43
      %p45 = scmp.ne.s32.totalorder %s37, %s40
      %p46 = scmp.eq.s32.totalorder %s13, 0
      %p47 = por %p45, %p46
      %p48 = scmp.ne.s32.totalorder %s37, %s40
      %p49 = scmp.eq.s32.totalorder %s18, 1
      %p50 = por %p48, %p49
      %p51 = scmp.ne.s32.totalorder %s40, %s41
      %p52 = scmp.eq.s32.totalorder %s18, 0
      %p53 = por %p51, %p52
      %p54 = scmp.ne.s32.totalorder %s40, %s41
      %p55 = scmp.eq.s32.totalorder %s19, 1
      %p56 = por %p54, %p55
      %p58 = scmp.ne.s32.totalorder %s41, %s57
      %p59 = scmp.eq.s32.totalorder %s19, 0
      %p60 = por %p58, %p59
      %s61 = ssub.s32 %s20, %s32
      %s62 = ssub.s32 %s21, %s28
      %s63 = sor.u32 %s61, %s62
      %p64 = scmp.eq.s32.totalorder %s63, 0
      %s66 = sadd.s32 %s65, 1
      %s67 = scalar_select %p64, %s65, %s66
      %p70 = pneg %p64
      %p71 = scmp.eq.s32.totalorder %s13, 1
      %p72 = por %p70, %p71
      %p73 = scmp.ne.s32.totalorder %s65, %s68
      %p74 = scmp.eq.s32.totalorder %s13, 0
      %p75 = por %p73, %p74
      %p76 = scmp.ne.s32.totalorder %s65, %s68
      %p77 = scmp.eq.s32.totalorder %s18, 1
      %p78 = por %p76, %p77
      %p79 = scmp.ne.s32.totalorder %s68, %s69
      %p80 = scmp.eq.s32.totalorder %s18, 0
      %p81 = por %p79, %p80
      %p82 = scmp.ne.s32.totalorder %s68, %s69
      %p83 = scmp.eq.s32.totalorder %s19, 1
      %p84 = por %p82, %p83
      %p86 = scmp.ne.s32.totalorder %s69, %s85
      %p87 = scmp.eq.s32.totalorder %s19, 0
      %p88 = por %p86, %p87
      %p89 = scmp.le.s32.totalorder 1, %s13
      %p90 = scmp.lt.s32.totalorder %s13, 3
      %p91 = pnand %p89, %p90
      %p92 = pneg %p91
      // Predicated region
      $region9: #{tpu_custom_call.1} parent=5 // pred_check
        _
      $region10: #{tpu_custom_call.1} parent=5 // pred_check_branch
        %94 = sbr.rel (%p91) target = $region12
      $region11: #{tpu_custom_call.1} parent=5 // pred_region
        %s95 = ssub.s32 %s13, 1
      $region12: #{tpu_custom_call.1} parent=5 // pred_fallthru
        _
      %p96 = scmp.lt.s32.totalorder %s13, 2
      // Predicated region
      $region13: #{tpu_custom_call.1} parent=5 // pred_check
        %p97 = pneg %p96
      $region14: #{tpu_custom_call.1} parent=5 // pred_check_branch
        %99 = sbr.rel (%p97) target = $region16
      $region15: #{tpu_custom_call.1} parent=5 // pred_region
        // Predicated region
        $region17: #{tpu_custom_call.1} parent=15 // pred_check
          %p100 = pneg %p47
        $region18: #{tpu_custom_call.1} parent=15 // pred_check_branch
          %102 = sbr.rel (%p100) target = $region20
        $region19: #{tpu_custom_call.1} parent=15 // pred_region
          %s103 = sand.u32 %s37, 1
          %s104 = scalar_lea.sflag [#allocation3], %s103
          %s105 = sand.u32 %s37, 1
          %s106 = smul.addr %s105, 8
          %s107 = scalar_lea.vmem [#allocation2], %s106
          %s109 = ssub.s32 128, 128
          %110 = vsyncadd %s104, %s109
          %s111 = sadd.s32 %s21, %s20
          %s112 = smul.addr %s111, 128
          %s113 = scalar_lea.hbm %s0, %s112
          %s115 = sshll.u32 %s107, 4
          %s116 = int_to_ptr.vmem [resolvable:$true] %s115
          %118 = dma.hbm_to_vmem [thread:$0]  %s113, 128, %s116, %s104
        $region20: #{tpu_custom_call.1} parent=15 // pred_fallthru
          _
      $region16: #{tpu_custom_call.1} parent=5 // pred_fallthru
        _
      %p119 = scmp.le.s32.totalorder 1, %s13
      %p120 = scmp.lt.s32.totalorder %s13, 3
      %p121 = pnand %p119, %p120
      %p122 = pneg %p121
      // Predicated region
      $region21: #{tpu_custom_call.1} parent=5 // pred_check
        _
      $region22: #{tpu_custom_call.1} parent=5 // pred_check_branch
        %124 = sbr.rel (%p121) target = $region24
      $region23: #{tpu_custom_call.1} parent=5 // pred_region
        %s125 = ssub.s32 %s13, 1
        %s126 = sand.u32 %s40, 1
        %s127 = scalar_lea.sflag [#allocation3], %s126
        %s128 = sand.u32 %s40, 1
        %s129 = smul.addr %s128, 8
        %s130 = scalar_lea.vmem [#allocation2], %s129
        // Predicated region
        $region25: #{tpu_custom_call.1} parent=23 // pred_check
          %p131 = pneg %p53
        $region26: #{tpu_custom_call.1} parent=23 // pred_check_branch
          %133 = sbr.rel (%p131) target = $region28
        $region27: #{tpu_custom_call.1} parent=23 // pred_region
          %134 = dma.done %s127, 128
        $region28: #{tpu_custom_call.1} parent=23 // pred_fallthru
          _
        %s135 = sand.u32 %s40, 1
        %s136 = scalar_lea.sflag [#allocation3], %s135
        %s137 = sand.u32 %s40, 1
        %s138 = smul.addr %s137, 8
        %s139 = scalar_lea.vmem [#allocation2], %s138
        %p140 = pneg %p53
        %p141 = pneg %p50
        %p142 = pneg %p81
        %p143 = pneg %p78
        %s144 = sand.u32 %s68, 1
        %s145 = scalar_lea.sflag [#allocation4], %s144
        %s146 = sand.u32 %s68, 1
        %s147 = smul.addr %s146, 16
        %s148 = scalar_lea.vmem [#allocation5], %s147
        %vm149 = vcmask 256000
        %150 = vst.msk [vmem:[%s148] sm:$0x7] %vm149, 0.0
        %vm151 = vcmask 258048
        %152 = vst.msk [vmem:[%s148 + $0xb] sm:$0x1f] %vm151, 0.0
        %v153 = vld [vmem:[%s130] sm:$0xff]
        %vm154 = vcmask 261120
        %155 = vst.msk [vmem:[%s148 + $0x3] sm:$0xff] %vm154, %v153
        %s156 = sand.u32 %s68, 1
        %s157 = scalar_lea.sflag [#allocation4], %s156
        %s158 = sand.u32 %s68, 1
        %s159 = smul.addr %s158, 16
        %s160 = scalar_lea.vmem [#allocation5], %s159
        // Predicated region
        $region29: #{tpu_custom_call.1} parent=23 // pred_check
          %p161 = pneg %p78
        $region30: #{tpu_custom_call.1} parent=23 // pred_check_branch
          %163 = sbr.rel (%p161) target = $region32
        $region31: #{tpu_custom_call.1} parent=23 // pred_region
          %s165 = ssub.s32 256, 256
          %166 = vsyncadd %s157, %s165
          %s167 = smul.addr %s22, 2
          %s168 = sadd.s32 %s23, %s167
          %s169 = smul.addr %s168, 128
          %s170 = scalar_lea.hbm %s1, %s169
          %s171 = sshll.u32 %s160, 4
          %s172 = int_to_ptr.vmem [resolvable:$true] %s171
          %177 = dma.vmem_to_hbm [thread:$0]  %s172, 256, %s170, %s157, 128, 128, 8
        $region32: #{tpu_custom_call.1} parent=23 // pred_fallthru
          _
      $region24: #{tpu_custom_call.1} parent=5 // pred_fallthru
        _
      %p178 = scmp.le.s32.totalorder 2, %s13
      // Predicated region
      $region33: #{tpu_custom_call.1} parent=5 // pred_check
        %p179 = pneg %p178
      $region34: #{tpu_custom_call.1} parent=5 // pred_check_branch
        %181 = sbr.rel (%p179) target = $region36
      $region35: #{tpu_custom_call.1} parent=5 // pred_region
        %s182 = ssub.s32 %s13, 2
        // Predicated region
        $region37: #{tpu_custom_call.1} parent=35 // pred_check
          %p183 = pneg %p84
        $region38: #{tpu_custom_call.1} parent=35 // pred_check_branch
          %185 = sbr.rel (%p183) target = $region40
        $region39: #{tpu_custom_call.1} parent=35 // pred_region
          %s186 = sand.u32 %s69, 1
          %s187 = scalar_lea.sflag [#allocation4], %s186
          %s188 = sand.u32 %s69, 1
          %s189 = smul.addr %s188, 16
          %s190 = scalar_lea.vmem [#allocation5], %s189
          %191 = dma.done %s187, 256
        $region40: #{tpu_custom_call.1} parent=35 // pred_fallthru
          _
      $region36: #{tpu_custom_call.1} parent=5 // pred_fallthru
        _
    $region6: #{tpu_custom_call.1} parent=1 // loop_footer
      %s17 = sadd.s32 1, %s13
    $region7: #{tpu_custom_call.1} parent=1 // loop_footer_branch
      %12 = sbr.rel target = $region3
    $region8: #{tpu_custom_call.1} parent=1 // loop_exit
      _
    %192 = vsyncpa [#allocation3], 1
    %s193 = scalar_lea.sflag [#allocation3], 1
    %194 = vsyncpa %s193, 1
    %195 = vsyncpa [#allocation4], 1
    %s196 = scalar_lea.sflag [#allocation4], 1
    %197 = vsyncpa %s196, 1

</llo_original>
